<compile_context>
chip_gen: v5e
topology: v5e:2x2
jax: 0.10.0
libtpu: 0.0.40
codegen_flags: <defaults>
</compile_context>

<pallas_src>
import math
import numpy as np
import jax
import jax.numpy as jnp
from jax.experimental import pallas as pl
from jax.experimental.pallas import tpu as pltpu


# ----------------------------------------------------------------------------
# Deterministic parameter construction (numpy replica of the PyTorch __init__)
# ----------------------------------------------------------------------------
def _freqspace(shape):
    n0, n1 = shape
    f1 = (np.arange(n0) - math.floor(n0 / 2)) * (2.0 / n0)
    f2 = (np.arange(n1) - math.floor(n1 / 2)) * (2.0 / n1)
    F2, F1 = np.meshgrid(f1, f2, indexing="ij")
    return F1, F2


def _csfsso(fs, N, g, fm, l, s, w, osl):
    fx, fy = _freqspace([N, N])
    fx = fx * fs / 2.0
    fy = fy * fs / 2.0
    f = np.sqrt(fx ** 2 + fy ** 2)
    f[f == 0] = 1e-4
    csft = g * (np.exp(-(f / fm)) - l * np.exp(-(f ** 2 / s ** 2)))
    oe = 1 - w * (4 * (1 - np.exp(-(f / osl))) * fx ** 2 * fy ** 2) / f ** 4
    csf = csft * oe
    # fsamp2: ifftshift -> ifft2 -> fftshift -> real -> rotate 180 deg
    hd = np.fft.ifftshift(csf)
    h = np.fft.fftshift(np.fft.ifft2(hd))
    return np.rot90(np.real(h), 2)


def _convmtx2(K, M, N):
    rows, cols = K.shape
    conv_vec_mat = np.concatenate([K, np.zeros((M - 1, cols))], axis=0)
    conv_vec = conv_vec_mat.T.flatten()
    height = conv_vec.shape[0]
    block_mat = np.zeros((height, M))
    cv = conv_vec.copy()
    for k in range(M):
        block_mat[:, k] = cv
        cv = np.roll(cv, 1)
    width = M
    conv_mat = np.zeros(((N + cols - 1) * (M + rows - 1), N * width))
    r0, r1, c0, c1 = 0, height, 0, width
    for _ in range(N):
        conv_mat[r0:r1, c0:c1] = block_mat
        r0 += rows + M - 1
        r1 += rows + M - 1
        c0 += width
        c1 += width
    return conv_mat


def _make_csf_kernel(fs, N):
    gN = _csfsso(fs, N, 330.74, 7.28, 0.837, 1.809, 1, 6.664)
    gN = gN / np.sum(gN)  # obliq == 1
    conv_mat = _convmtx2(gN, N, N)
    marco = np.zeros((2 * N - 1, 2 * N - 1))
    d0 = math.ceil(N / 2) - 1
    d1 = math.ceil(N / 2) + N - 1
    marco[d0:d1, d0:d1] = 1
    filas = marco.flatten()
    hh = conv_mat[filas > 0]
    hh = np.diag(1.0 / hh.sum(axis=1)) @ hh
    return hh


def _make_2d_gauss_kernel(fs, N, sigma):
    val = np.linspace(0, N / fs, N + 1)[:-1]
    dx = val[1] - val[0]
    cx = np.repeat(val, N)  # pixel p -> val[p // N]
    cy = np.tile(val, N)    # pixel p -> val[p %  N]
    delta = (cx[:, None] - cx[None, :]) ** 2 + (cy[:, None] - cy[None, :]) ** 2
    return dx ** 2 * (1.0 / (2 * math.pi * sigma ** 2)) * np.exp(-delta / (2 * sigma ** 2))


def build_layer3_params():
    fs, N = 64, 4
    Hcsf = _make_csf_kernel(fs, N)
    lam = 5e-5
    L = Hcsf + lam * np.eye(N * N)
    Hc, Hs = 1.0, 0.02
    H = Hc * _make_2d_gauss_kernel(fs, N, Hs)
    return np.asarray(L, np.float32), np.asarray(H, np.float32)


# ----------------------------------------------------------------------------
# Pallas kernel (hot path: two 16x16 matmuls + elementwise per patch tile)
# ----------------------------------------------------------------------------
_GAMMA = 1.5
_BVAL = 0.04


def _layer3_kernel(L_ref, H_ref, x_ref, yy_ref, xim_ref):
    L = L_ref[...]
    Hg = H_ref[...]
    x = x_ref[...]
    # Keep the matmuls in f32 (bf16 single-pass would break yy's tolerance).
    # If a bundle dump ever shows the MXU as the binding slot (multi-pass f32),
    # fold r patch groups into the sublanes with block-diagonal kron(I_r, L/H).
    yy = jnp.dot(L, x, preferred_element_type=jnp.float32)
    y = jnp.abs(yy)
    r = jnp.sqrt(y)
    e = y * r            # |yy| ** 1.5  (exact for gamma = 1.5)
    num = yy * r         # sign(yy) * |yy| ** 1.5  (no compare/select needed)
    denom = _BVAL + jnp.dot(Hg, e, preferred_element_type=jnp.float32)
    # EUP approximate reciprocal + one Newton-Raphson step (denom >= b = 0.04,
    # so this is well-conditioned, accurate far beyond the 1e-5 tolerance).
    inv = pl.reciprocal(denom, approx=True)
    inv = inv * (2.0 - denom * inv)
    yy_ref[...] = yy.astype(yy_ref.dtype)
    xim_ref[...] = (num * inv).astype(xim_ref.dtype)


def _round_up(a, m):
    return ((a + m - 1) // m) * m


def layer3_forward(L, H, x, tn=65536):
    """x: (d, Npatches) float32. Returns (yy, xim), both (d, Npatches) float32."""
    d, P = x.shape

    # Generation-aware lane-tile cap: keep the 3 double-buffered streamed
    # arrays (x, yy, xim) at <= 3/8 of physical VMEM (64 MiB v7x, 128 MiB
    # v5e/v6e -> cap of 65536 lanes on v7x, even larger elsewhere).
    try:
        vmem_cap = pltpu.get_tpu_info().vmem_capacity_bytes
    except Exception:  # be conservative if the query is unavailable
        vmem_cap = 64 << 20
    lane_cap = ((vmem_cap * 3 // 8) // (2 * 3 * d * 4)) // 128 * 128
    tn = max(128, min(tn, lane_cap))

    # Pad only to a 128-lane boundary; then pick a tile that divides the padded
    # extent (adds < 128 extra lanes per grid step instead of up to a whole
    # tile).  Zero padding is benign: yy = 0, e = 0, denom = b, xim = 0.
    Pa = _round_up(P, 128)
    nb = -(-Pa // tn)                       # blocks needed at the lane cap
    if Pa > 256:
        nb = max(nb, 2)                     # keep both v7x TensorCores busy
    if nb > 1 and nb % 2:
        nb += 1                             # even grid splits cleanly over 2 TCs
    tile = _round_up(-(-Pa // nb), 128)
    Ppad = tile * nb
    if Ppad != P:
        x = jnp.pad(x, ((0, 0), (0, Ppad - P)))

    # Explicit VMEM budget: 3 streamed arrays double-buffered + resident L/H,
    # plus margin for Mosaic internal scratch.  Capped at 40 MiB so >= 24 MiB
    # of v7x's 64 MiB physical VMEM stays free; no deeper pipelining requested.
    stream_bytes = 2 * 3 * d * tile * 4
    const_bytes = 2 * 2 * d * d * 4
    vmem_limit = min(max(stream_bytes + const_bytes + (6 << 20), 4 << 20), 40 << 20)

    cost = pl.CostEstimate(
        flops=(4 * d * d + 8 * d) * Ppad,   # two dxd matmuls + elementwise
        transcendentals=2 * d * Ppad,       # sqrt + reciprocal per element
        bytes_accessed=3 * d * Ppad * 4 + 2 * d * d * 4,
    )

    yy, xim = pl.pallas_call(
        _layer3_kernel,
        out_shape=(jax.ShapeDtypeStruct((d, Ppad), jnp.float32),
                   jax.ShapeDtypeStruct((d, Ppad), jnp.float32)),
        grid_spec=pltpu.PrefetchScalarGridSpec(
            num_scalar_prefetch=0,
            grid=(nb,),
            in_specs=[
                pl.BlockSpec((d, d), lambda j: (0, 0)),      # L (resident)
                pl.BlockSpec((d, d), lambda j: (0, 0)),      # H (resident)
                pl.BlockSpec((d, tile), lambda j: (0, j)),   # x tile over patches
            ],
            out_specs=[
                pl.BlockSpec((d, tile), lambda j: (0, j)),   # yy
                pl.BlockSpec((d, tile), lambda j: (0, j)),   # xim
            ],
        ),
        compiler_params=pltpu.CompilerParams(
            dimension_semantics=("parallel",),
            vmem_limit_bytes=vmem_limit),
        cost_estimate=cost,
    )(L, H, x)

    if Ppad != P:
        yy = yy[:, :P]
        xim = xim[:, :P]
    return yy, xim


# ----------------------------------------------------------------------------
# Driver
# ----------------------------------------------------------------------------
if __name__ == "__main__":
    Lnp, Hnp = build_layer3_params()
    d = Lnp.shape[0]          # 16
    n_patches = 500           # small; deliberately NOT a multiple of 128

    key = jax.random.PRNGKey(0)
    x = jax.random.normal(key, (d, n_patches), dtype=jnp.float32)

    L = jnp.asarray(Lnp)
    H = jnp.asarray(Hnp)

    yy, xim = layer3_forward(L, H, x)
    yy = jax.block_until_ready(yy)
    xim = jax.block_until_ready(xim)

    # Pure-numpy reference for correctness.
    xn = np.asarray(x, np.float32)
    yy_ref = Lnp @ xn
    sgn = np.sign(yy_ref)
    ya = np.abs(yy_ref)
    e = ya ** 1.5
    xim_ref = sgn * e / (0.04 + Hnp @ e)

    np.testing.assert_allclose(np.asarray(yy), yy_ref, rtol=1e-4, atol=1e-5)
    np.testing.assert_allclose(np.asarray(xim), xim_ref, rtol=1e-4, atol=1e-5)

    print("KERNEL_OK")
</pallas_src>

<mosaic_0001>
module attributes {stable_mosaic.version = 11 : i64} {
  func.func @_layer3_kernel(%arg0: i32, %arg1: memref<16x16xf32, #tpu.memory_space<vmem>>, %arg2: memref<16x16xf32, #tpu.memory_space<vmem>>, %arg3: memref<16x256xf32, #tpu.memory_space<vmem>>, %arg4: memref<16x256xf32, #tpu.memory_space<vmem>>, %arg5: memref<16x256xf32, #tpu.memory_space<vmem>>) attributes {dimension_semantics = [#tpu.dimension_semantics<parallel>], iteration_bounds = array<i64: 2>, scalar_prefetch = 0 : i64, scratch_operands = 0 : i64, tpu.core_type = #tpu.core_type<tc>, window_params = [{pipeline_mode = #tpu.pipeline_mode<synchronous>, transform_indices = @transform_0, window_bounds = array<i64: 16, 16>}, {pipeline_mode = #tpu.pipeline_mode<synchronous>, transform_indices = @transform_1, window_bounds = array<i64: 16, 16>}, {transform_indices = @transform_2, window_bounds = array<i64: 16, 256>}, {transform_indices = @transform_3, window_bounds = array<i64: 16, 256>}, {transform_indices = @transform_4, window_bounds = array<i64: 16, 256>}]} {
    %c0 = arith.constant 0 : index
    %c0_0 = arith.constant 0 : index
    %0 = vector.load %arg1[%c0, %c0_0] : memref<16x16xf32, #tpu.memory_space<vmem>>, vector<16x16xf32>
    %c0_1 = arith.constant 0 : index
    %c0_2 = arith.constant 0 : index
    %1 = vector.load %arg2[%c0_1, %c0_2] : memref<16x16xf32, #tpu.memory_space<vmem>>, vector<16x16xf32>
    %c0_3 = arith.constant 0 : index
    %c0_4 = arith.constant 0 : index
    %2 = vector.load %arg3[%c0_3, %c0_4] : memref<16x256xf32, #tpu.memory_space<vmem>>, vector<16x256xf32>
    %cst = arith.constant dense<0.000000e+00> : vector<16x256xf32>
    %3 = tpu.matmul %0, %2, %cst {dimension_numbers = #tpu.dot_dimension_numbers<[1], [0], [0], [1], [0, 0, 1, 1], [], []>} : vector<16x16xf32>, vector<16x256xf32>, vector<16x256xf32> -> vector<16x256xf32>
    %4 = math.absf %3 : vector<16x256xf32>
    %5 = math.sqrt %4 : vector<16x256xf32>
    %6 = arith.mulf %4, %5 : vector<16x256xf32>
    %7 = arith.mulf %3, %5 : vector<16x256xf32>
    %cst_5 = arith.constant dense<0.000000e+00> : vector<16x256xf32>
    %8 = tpu.matmul %1, %6, %cst_5 {dimension_numbers = #tpu.dot_dimension_numbers<[1], [0], [0], [1], [0, 0, 1, 1], [], []>} : vector<16x16xf32>, vector<16x256xf32>, vector<16x256xf32> -> vector<16x256xf32>
    %cst_6 = arith.constant 4.000000e-02 : f32
    %9 = vector.broadcast %cst_6 : f32 to vector<16x256xf32>
    %10 = arith.addf %9, %8 : vector<16x256xf32>
    %11 = tpu.reciprocal %10 {approx = true} : vector<16x256xf32> -> vector<16x256xf32>
    %12 = arith.mulf %10, %11 : vector<16x256xf32>
    %cst_7 = arith.constant 2.000000e+00 : f32
    %13 = vector.broadcast %cst_7 : f32 to vector<16x256xf32>
    %14 = arith.subf %13, %12 : vector<16x256xf32>
    %15 = arith.mulf %11, %14 : vector<16x256xf32>
    %c0_8 = arith.constant 0 : index
    %c0_9 = arith.constant 0 : index
    %16 = vector.load %arg4[%c0_8, %c0_9] : memref<16x256xf32, #tpu.memory_space<vmem>>, vector<16x256xf32>
    tpu.vector_store %arg4[%c0_8, %c0_9], %3 {strides = array<i32>} : memref<16x256xf32, #tpu.memory_space<vmem>>, vector<16x256xf32>,
    %17 = arith.mulf %7, %15 : vector<16x256xf32>
    %c0_10 = arith.constant 0 : index
    %c0_11 = arith.constant 0 : index
    %18 = vector.load %arg5[%c0_10, %c0_11] : memref<16x256xf32, #tpu.memory_space<vmem>>, vector<16x256xf32>
    tpu.vector_store %arg5[%c0_10, %c0_11], %17 {strides = array<i32>} : memref<16x256xf32, #tpu.memory_space<vmem>>, vector<16x256xf32>,
    return
  }
  func.func @transform_0(%arg0: i32) -> (i32, i32) {
    %c0_i32 = arith.constant 0 : i32
    %c0_i32_0 = arith.constant 0 : i32
    %c0_i32_1 = arith.constant 0 : i32
    return %c0_i32, %c0_i32_0 : i32, i32
  }
  func.func @transform_1(%arg0: i32) -> (i32, i32) {
    %c0_i32 = arith.constant 0 : i32
    %c0_i32_0 = arith.constant 0 : i32
    %c0_i32_1 = arith.constant 0 : i32
    return %c0_i32, %c0_i32_0 : i32, i32
  }
  func.func @transform_2(%arg0: i32) -> (i32, i32) {
    %c0_i32 = arith.constant 0 : i32
    %c0_i32_0 = arith.constant 0 : i32
    return %c0_i32, %arg0 : i32, i32
  }
  func.func @transform_3(%arg0: i32) -> (i32, i32) {
    %c0_i32 = arith.constant 0 : i32
    %c0_i32_0 = arith.constant 0 : i32
    return %c0_i32, %arg0 : i32, i32
  }
  func.func @transform_4(%arg0: i32) -> (i32, i32) {
    %c0_i32 = arith.constant 0 : i32
    %c0_i32_0 = arith.constant 0 : i32
    return %c0_i32, %arg0 : i32, i32
  }
}

</mosaic_0001>

<llo_original>
// kernel: tpu_custom_call.1
$region0: #{tpu_custom_call.1}
  #allocation0 [shape = 'u32[]', space=smem, size = 0x4, offset = 0x4, fixed_abs, tag = 'smem constant byte address 0x4 - core index']
  #allocation1 [shape = 'u32[72,128]{1,0:T(1,128)}', space=vmem, size = 0x9000, scoped, tag = 'internal scratch']
  %s0 = inlined_call_operand.hbm [shape: f32[16,16], index: 0, kind: input, shape index: {}]
  %s1 = inlined_call_operand.hbm [shape: f32[16,16], index: 1, kind: input, shape index: {}]
  %s2 = inlined_call_operand.hbm [shape: f32[16,512], index: 2, kind: input, shape index: {}]
  %s3 = inlined_call_operand.hbm [shape: f32[16,512], index: 3, kind: output, shape index: {0}]
  %s4 = inlined_call_operand.hbm [shape: f32[16,512], index: 4, kind: output, shape index: {1}]
  %5 = xla_tuple %s3, %s4
  %s6 = sld [smem:[#allocation0]]
  $region65: #{tpu_custom_call.1} parent=0
    _
  %s8 = ssub.s32 1, %s6
  %s9 = scalar_select 0, %s8, %s6
  $region1: #{tpu_custom_call.1} parent=0
    #allocation2 [shape = 'u8[8192]{0}', space=vmem, size = 0x2000, scoped, tag = 'input window, operand 0, single buffered']
    #allocation3 [shape = 's32[2]{0}', space=sflag, size = 0x8, scoped, tag = 'scoped memory for tpu_custom_call.1']
    #allocation4 [shape = 's32[2]{0}', space=sflag, size = 0x8, scoped, tag = 'scoped memory for tpu_custom_call.1']
    #allocation5 [shape = 'u8[8192]{0}', space=vmem, size = 0x2000, scoped, tag = 'input window, operand 1, single buffered']
    #allocation6 [shape = 's32[1]{0}', space=sflag, size = 0x4, scoped, tag = 'scoped memory for tpu_custom_call.1']
    #allocation7 [shape = 'u8[32768]{0}', space=vmem, size = 0x8000, scoped, tag = 'input window, operand 2']
    #allocation8 [shape = 'u8[32768]{0}', space=vmem, size = 0x8000, scoped, tag = 'output window, operand 0']
    #allocation9 [shape = 'u8[32768]{0}', space=vmem, size = 0x8000, scoped, tag = 'output window, operand 1']
    #allocation10 [shape = 's32[2]{0}', space=sflag, size = 0x8, scoped, tag = 'scoped memory for tpu_custom_call.1']
    %10 = vsyncpa [#allocation3], 0
    %11 = vsyncpa [#allocation6], 0
    %12 = vsyncpa [#allocation4], 0
    %s13 = scalar_lea.sflag [#allocation4], 1
    %14 = vsyncpa %s13, 0
    %15 = vsyncpa [#allocation10], 0
    %s16 = scalar_lea.sflag [#allocation10], 1
    %17 = vsyncpa %s16, 0
    loop: start=0, step=1, limit=4
    $region2: #{tpu_custom_call.1} parent=1 // loop_pre_header
      _
    $region3: #{tpu_custom_call.1} parent=1 // loop_header
      %s19 = sphi 0, %s23
      %p20 = scmp.ge.s32.totalorder %s19, 4
      %s27 = sphi 0, %s27
      %s29 = sphi 0, %s27
      %s30 = sphi 0, %s29
      %s44 = sphi 0, %s30
      %s48 = sphi 0, %s48
      %s50 = sphi 0, %s48
      %s51 = sphi 0, %s50
      %s65 = sphi 0, %s51
      %s71 = sphi 0, %s73
      %s74 = sphi 0, %s71
      %s75 = sphi 0, %s74
      %s91 = sphi 0, %s75
      %s97 = sphi 0, %s99
      %s100 = sphi 0, %s97
      %s101 = sphi 0, %s100
      %s117 = sphi 0, %s101
      %s123 = sphi 0, %s125
      %s126 = sphi 0, %s123
      %s127 = sphi 0, %s126
      %s143 = sphi 0, %s127
    $region4: #{tpu_custom_call.1} parent=1 // loop_header_branch
      %22 = sbr.rel (%p20) target = $region8
    $region5: #{tpu_custom_call.1} parent=1 // loop_body
      %s24 = ssub.s32 %s19, 1
      %s25 = ssub.s32 %s19, 2
      %s26 = sadd.s32 %s19, 1
      %s28 = sadd.s32 %s27, 1
      %p31 = scmp.eq.s32.totalorder %s19, 1
      %p32 = scmp.ne.s32.totalorder %s27, %s29
      %p33 = scmp.eq.s32.totalorder %s19, 0
      %p34 = por %p32, %p33
      %p35 = scmp.ne.s32.totalorder %s27, %s29
      %p36 = scmp.eq.s32.totalorder %s24, 1
      %p37 = por %p35, %p36
      %p38 = scmp.ne.s32.totalorder %s29, %s30
      %p39 = scmp.eq.s32.totalorder %s24, 0
      %p40 = por %p38, %p39
      %p41 = scmp.ne.s32.totalorder %s29, %s30
      %p42 = scmp.eq.s32.totalorder %s25, 1
      %p43 = por %p41, %p42
      %p45 = scmp.ne.s32.totalorder %s30, %s44
      %p46 = scmp.eq.s32.totalorder %s25, 0
      %p47 = por %p45, %p46
      %s49 = sadd.s32 %s48, 1
      %p52 = scmp.eq.s32.totalorder %s19, 1
      %p53 = scmp.ne.s32.totalorder %s48, %s50
      %p54 = scmp.eq.s32.totalorder %s19, 0
      %p55 = por %p53, %p54
      %p56 = scmp.ne.s32.totalorder %s48, %s50
      %p57 = scmp.eq.s32.totalorder %s24, 1
      %p58 = por %p56, %p57
      %p59 = scmp.ne.s32.totalorder %s50, %s51
      %p60 = scmp.eq.s32.totalorder %s24, 0
      %p61 = por %p59, %p60
      %p62 = scmp.ne.s32.totalorder %s50, %s51
      %p63 = scmp.eq.s32.totalorder %s25, 1
      %p64 = por %p62, %p63
      %p66 = scmp.ne.s32.totalorder %s51, %s65
      %p67 = scmp.eq.s32.totalorder %s25, 0
      %p68 = por %p66, %p67
      %s69 = ssub.s32 %s19, %s26
      %p70 = scmp.eq.s32.totalorder %s69, 0
      %s72 = sadd.s32 %s71, 1
      %s73 = scalar_select %p70, %s71, %s72
      %p76 = pneg %p70
      %p77 = scmp.eq.s32.totalorder %s19, 1
      %p78 = por %p76, %p77
      %p79 = scmp.ne.s32.totalorder %s71, %s74
      %p80 = scmp.eq.s32.totalorder %s19, 0
      %p81 = por %p79, %p80
      %p82 = scmp.ne.s32.totalorder %s71, %s74
      %p83 = scmp.eq.s32.totalorder %s24, 1
      %p84 = por %p82, %p83
      %p85 = scmp.ne.s32.totalorder %s74, %s75
      %p86 = scmp.eq.s32.totalorder %s24, 0
      %p87 = por %p85, %p86
      %p88 = scmp.ne.s32.totalorder %s74, %s75
      %p89 = scmp.eq.s32.totalorder %s25, 1
      %p90 = por %p88, %p89
      %p92 = scmp.ne.s32.totalorder %s75, %s91
      %p93 = scmp.eq.s32.totalorder %s25, 0
      %p94 = por %p92, %p93
      %s95 = ssub.s32 %s19, %s26
      %p96 = scmp.eq.s32.totalorder %s95, 0
      %s98 = sadd.s32 %s97, 1
      %s99 = scalar_select %p96, %s97, %s98
      %p102 = pneg %p96
      %p103 = scmp.eq.s32.totalorder %s19, 1
      %p104 = por %p102, %p103
      %p105 = scmp.ne.s32.totalorder %s97, %s100
      %p106 = scmp.eq.s32.totalorder %s19, 0
      %p107 = por %p105, %p106
      %p108 = scmp.ne.s32.totalorder %s97, %s100
      %p109 = scmp.eq.s32.totalorder %s24, 1
      %p110 = por %p108, %p109
      %p111 = scmp.ne.s32.totalorder %s100, %s101
      %p112 = scmp.eq.s32.totalorder %s24, 0
      %p113 = por %p111, %p112
      %p114 = scmp.ne.s32.totalorder %s100, %s101
      %p115 = scmp.eq.s32.totalorder %s25, 1
      %p116 = por %p114, %p115
      %p118 = scmp.ne.s32.totalorder %s101, %s117
      %p119 = scmp.eq.s32.totalorder %s25, 0
      %p120 = por %p118, %p119
      %s121 = ssub.s32 %s19, %s26
      %p122 = scmp.eq.s32.totalorder %s121, 0
      %s124 = sadd.s32 %s123, 1
      %s125 = scalar_select %p122, %s123, %s124
      %p128 = pneg %p122
      %p129 = scmp.eq.s32.totalorder %s19, 1
      %p130 = por %p128, %p129
      %p131 = scmp.ne.s32.totalorder %s123, %s126
      %p132 = scmp.eq.s32.totalorder %s19, 0
      %p133 = por %p131, %p132
      %p134 = scmp.ne.s32.totalorder %s123, %s126
      %p135 = scmp.eq.s32.totalorder %s24, 1
      %p136 = por %p134, %p135
      %p137 = scmp.ne.s32.totalorder %s126, %s127
      %p138 = scmp.eq.s32.totalorder %s24, 0
      %p139 = por %p137, %p138
      %p140 = scmp.ne.s32.totalorder %s126, %s127
      %p141 = scmp.eq.s32.totalorder %s25, 1
      %p142 = por %p140, %p141
      %p144 = scmp.ne.s32.totalorder %s127, %s143
      %p145 = scmp.eq.s32.totalorder %s25, 0
      %p146 = por %p144, %p145
      %p147 = scmp.le.s32.totalorder 1, %s19
      %p148 = scmp.lt.s32.totalorder %s19, 3
      %p149 = pnand %p147, %p148
      %p150 = pneg %p149
      // Predicated region
      $region9: #{tpu_custom_call.1} parent=5 // pred_check
        _
      $region10: #{tpu_custom_call.1} parent=5 // pred_check_branch
        %152 = sbr.rel (%p149) target = $region12
      $region11: #{tpu_custom_call.1} parent=5 // pred_region
        %s153 = ssub.s32 %s19, 1
        // Predicated region
        $region13: #{tpu_custom_call.1} parent=11 // pred_check
          %p154 = pneg %p40
        $region14: #{tpu_custom_call.1} parent=11 // pred_check_branch
          %156 = sbr.rel (%p154) target = $region16
        $region15: #{tpu_custom_call.1} parent=11 // pred_region
          %158 = vsyncadd [#allocation3], 0
          %s159 = sshll.u32 %s0, 4
          %s160 = int_to_ptr.hbm [resolvable:$true] %s159
          %s161 = sshll.u32 [#allocation2], 4
          %s162 = int_to_ptr.vmem [resolvable:$true] %s161
          %167 = dma.hbm_to_vmem [thread:$0]  %s160, 256, %s162, [#allocation3], 128, 128, 8
        $region16: #{tpu_custom_call.1} parent=11 // pred_fallthru
          _
        // Predicated region
        $region17: #{tpu_custom_call.1} parent=11 // pred_check
          %p168 = pneg %p61
        $region18: #{tpu_custom_call.1} parent=11 // pred_check_branch
          %170 = sbr.rel (%p168) target = $region20
        $region19: #{tpu_custom_call.1} parent=11 // pred_region
          %172 = vsyncadd [#allocation6], 0
          %s173 = sshll.u32 %s1, 4
          %s174 = int_to_ptr.hbm [resolvable:$true] %s173
          %s175 = sshll.u32 [#allocation5], 4
          %s176 = int_to_ptr.vmem [resolvable:$true] %s175
          %181 = dma.hbm_to_vmem [thread:$0]  %s174, 256, %s176, [#allocation6], 128, 128, 8
        $region20: #{tpu_custom_call.1} parent=11 // pred_fallthru
          _
      $region12: #{tpu_custom_call.1} parent=5 // pred_fallthru
        _
      %p182 = scmp.lt.s32.totalorder %s19, 2
      // Predicated region
      $region21: #{tpu_custom_call.1} parent=5 // pred_check
        %p183 = pneg %p182
      $region22: #{tpu_custom_call.1} parent=5 // pred_check_branch
        %185 = sbr.rel (%p183) target = $region24
      $region23: #{tpu_custom_call.1} parent=5 // pred_region
        // Predicated region
        $region25: #{tpu_custom_call.1} parent=23 // pred_check
          %p186 = pneg %p81
        $region26: #{tpu_custom_call.1} parent=23 // pred_check_branch
          %188 = sbr.rel (%p186) target = $region28
        $region27: #{tpu_custom_call.1} parent=23 // pred_region
          %s189 = sand.u32 %s19, 1
          %s190 = scalar_lea.sflag [#allocation3], %s189
          %s191 = sand.u32 %s71, 1
          %s192 = smul.addr %s191, 32
          %s193 = scalar_lea.vmem [#allocation7], %s192
          %s194 = smul.u32 2, %s19
          %196 = vsyncadd %s190, 0
          %s197 = smul.addr %s194, 8
          %s198 = scalar_lea.hbm %s2, %s197
          %s199 = sshll.u32 %s198, 4
          %s200 = int_to_ptr.hbm [resolvable:$true] %s199
          %s201 = sshll.u32 %s193, 4
          %s202 = int_to_ptr.vmem [resolvable:$true] %s201
          %207 = dma.hbm_to_vmem [thread:$0]  %s200, 512, %s202, %s190, 512, 256, 16
        $region28: #{tpu_custom_call.1} parent=23 // pred_fallthru
          _
      $region24: #{tpu_custom_call.1} parent=5 // pred_fallthru
        _
      %p208 = scmp.le.s32.totalorder 1, %s19
      %p209 = scmp.lt.s32.totalorder %s19, 3
      %p210 = pnand %p208, %p209
      %p211 = pneg %p210
      // Predicated region
      $region29: #{tpu_custom_call.1} parent=5 // pred_check
        _
      $region30: #{tpu_custom_call.1} parent=5 // pred_check_branch
        %213 = sbr.rel (%p210) target = $region32
      $region31: #{tpu_custom_call.1} parent=5 // pred_region
        %s214 = ssub.s32 %s19, 1
        // Predicated region
        $region33: #{tpu_custom_call.1} parent=31 // pred_check
          %p215 = pneg %p40
        $region34: #{tpu_custom_call.1} parent=31 // pred_check_branch
          %217 = sbr.rel (%p215) target = $region36
        $region35: #{tpu_custom_call.1} parent=31 // pred_region
          %219 = dma.done [#allocation3], 256
        $region36: #{tpu_custom_call.1} parent=31 // pred_fallthru
          _
        // Predicated region
        $region37: #{tpu_custom_call.1} parent=31 // pred_check
          %p220 = pneg %p61
        $region38: #{tpu_custom_call.1} parent=31 // pred_check_branch
          %222 = sbr.rel (%p220) target = $region40
        $region39: #{tpu_custom_call.1} parent=31 // pred_region
          %224 = dma.done [#allocation6], 256
        $region40: #{tpu_custom_call.1} parent=31 // pred_fallthru
          _
        %s225 = sand.u32 %s24, 1
        %s226 = scalar_lea.sflag [#allocation3], %s225
        %s227 = sand.u32 %s74, 1
        %s228 = smul.addr %s227, 32
        %s229 = scalar_lea.vmem [#allocation7], %s228
        // Predicated region
        $region41: #{tpu_custom_call.1} parent=31 // pred_check
          %p230 = pneg %p87
        $region42: #{tpu_custom_call.1} parent=31 // pred_check_branch
          %232 = sbr.rel (%p230) target = $region44
        $region43: #{tpu_custom_call.1} parent=31 // pred_region
          %234 = dma.done %s226, 512
        $region44: #{tpu_custom_call.1} parent=31 // pred_fallthru
          _
        %p235 = pneg %p40
        %p236 = pneg %p37
        %p237 = pneg %p61
        %p238 = pneg %p58
        %s239 = sand.u32 %s24, 1
        %s240 = scalar_lea.sflag [#allocation3], %s239
        %s241 = sand.u32 %s74, 1
        %s242 = smul.addr %s241, 32
        %s243 = scalar_lea.vmem [#allocation7], %s242
        %p244 = pneg %p87
        %p245 = pneg %p84
        %p246 = pneg %p113
        %p247 = pneg %p110
        %s248 = sand.u32 %s100, 1
        %s249 = scalar_lea.sflag [#allocation4], %s248
        %s250 = sand.u32 %s100, 1
        %s251 = smul.addr %s250, 32
        %s252 = scalar_lea.vmem [#allocation8], %s251
        %p253 = pneg %p139
        %p254 = pneg %p136
        %s255 = sand.u32 %s126, 1
        %s256 = scalar_lea.sflag [#allocation10], %s255
        %s257 = sand.u32 %s126, 1
        %s258 = smul.addr %s257, 32
        %s259 = scalar_lea.vmem [#allocation9], %s258
        %s260 = smul.u32 2, %s24
        %s261 = smul.u32 2, %s24
        %s262 = smul.u32 2, %s24
        %v263 = vld [vmem:[#allocation2] sm:$0xff]
        %v264 = vld [vmem:[#allocation2 + $0x8] sm:$0xff]
        %v265 = vld [vmem:[#allocation5] sm:$0xff]
        %v266 = vld [vmem:[#allocation5 + $0x8] sm:$0xff]
        %v267 = vld [vmem:[%s229] sm:$0xff]
        %v268 = vld [vmem:[%s229 + $0x8] sm:$0xff]
        %v269 = vld [vmem:[%s229 + $0x10] sm:$0xff]
        %v270 = vld [vmem:[%s229 + $0x18] sm:$0xff]
        %vm271 = vcmask 130048
        %v273 = vsel %vm271, %v263, 0
        %v276 = vsel %vm271, %v264, 0
        %278 = vmatpush.msra.mxu0 0.0
        %279 = vmatpush.msra.mxu0 0.0
        %280 = vmatpush.msra.mxu0 0.0
        %281 = vmatpush.msra.mxu0 0.0
        %282 = vmatpush.msra.mxu0 0.0
        %283 = vmatpush.msra.mxu0 0.0
        %284 = vmatpush.msra.mxu0 0.0
        %285 = vmatpush.msra.mxu0 0.0
        %286 = vmatpush.msra.mxu0 0.0
        %287 = vmatpush.msra.mxu0 0.0
        %288 = vmatpush.msra.mxu0 0.0
        %289 = vmatpush.msra.mxu0 0.0
        %290 = vmatpush.msra.mxu0 0.0
        %291 = vmatpush.msra.mxu0 0.0
        %292 = vmatpush.msra.mxu0 %v269
        %293 = vmatpush.msra.mxu0 %v267
        %294 = vmatmul.f32.gmra.mxu0 %v273
        %v295 = vpop.f32.mrf.mxu0
        %v296 = vadd.f32 0.0, %v295
        %297 = vmatmul.f32.gmra.mxu0 %v276
        %v298 = vpop.f32.mrf.mxu0
        %v299 = vadd.f32 0.0, %v298
        %300 = vdwg.mxu0
        %301 = vmatpush.msra.mxu0 0.0
        %302 = vmatpush.msra.mxu0 0.0
        %303 = vmatpush.msra.mxu0 0.0
        %304 = vmatpush.msra.mxu0 0.0
        %305 = vmatpush.msra.mxu0 0.0
        %306 = vmatpush.msra.mxu0 0.0
        %307 = vmatpush.msra.mxu0 0.0
        %308 = vmatpush.msra.mxu0 0.0
        %309 = vmatpush.msra.mxu0 0.0
        %310 = vmatpush.msra.mxu0 0.0
        %311 = vmatpush.msra.mxu0 0.0
        %312 = vmatpush.msra.mxu0 0.0
        %313 = vmatpush.msra.mxu0 0.0
        %314 = vmatpush.msra.mxu0 0.0
        %315 = vmatpush.msra.mxu0 %v270
        %316 = vmatpush.msra.mxu0 %v268
        %317 = vmatmul.f32.gmra.mxu0 %v273
        %v318 = vpop.f32.mrf.mxu0
        %v319 = vadd.f32 0.0, %v318
        %320 = vmatmul.f32.gmra.mxu0 %v276
        %v321 = vpop.f32.mrf.mxu0
        %v322 = vadd.f32 0.0, %v321
        %323 = vdwg.mxu0
        %v324 = vand.u32 2147483647, %v296
        %v325 = vand.u32 2147483647, %v319
        %v326 = vand.u32 2147483647, %v299
        %v327 = vand.u32 2147483647, %v322
        %v328 = vrsqrt.pop %v324
        %v329 = vmul.f32 %v328, %v324
        %v330 = vmul.f32 %v329, %v328
        %v331 = vmul.f32 0.5, %v330
        %v332 = vsub.f32 1.5, %v331
        %v333 = vmul.f32 %v328, %v332
        %v334 = vmul.f32 %v324, %v333
        %vm335 = vcmp.eq.f32.partialorder %v324, inf
        %v336 = vsel %vm335, %v324, %v334
        %vm337 = vcmp.eq.f32.partialorder %v324, 0.0
        %v338 = vand.u32 %v324, 2147483648
        %v339 = vsel %vm337, %v338, %v336
        %v340 = vrsqrt.pop %v325
        %v341 = vmul.f32 %v340, %v325
        %v342 = vmul.f32 %v341, %v340
        %v343 = vmul.f32 0.5, %v342
        %v344 = vsub.f32 1.5, %v343
        %v345 = vmul.f32 %v340, %v344
        %v346 = vmul.f32 %v325, %v345
        %vm347 = vcmp.eq.f32.partialorder %v325, inf
        %v348 = vsel %vm347, %v325, %v346
        %vm349 = vcmp.eq.f32.partialorder %v325, 0.0
        %v350 = vand.u32 %v325, 2147483648
        %v351 = vsel %vm349, %v350, %v348
        %v352 = vrsqrt.pop %v326
        %v353 = vmul.f32 %v352, %v326
        %v354 = vmul.f32 %v353, %v352
        %v355 = vmul.f32 0.5, %v354
        %v356 = vsub.f32 1.5, %v355
        %v357 = vmul.f32 %v352, %v356
        %v358 = vmul.f32 %v326, %v357
        %vm359 = vcmp.eq.f32.partialorder %v326, inf
        %v360 = vsel %vm359, %v326, %v358
        %vm361 = vcmp.eq.f32.partialorder %v326, 0.0
        %v362 = vand.u32 %v326, 2147483648
        %v363 = vsel %vm361, %v362, %v360
        %v364 = vrsqrt.pop %v327
        %v365 = vmul.f32 %v364, %v327
        %v366 = vmul.f32 %v365, %v364
        %v367 = vmul.f32 0.5, %v366
        %v368 = vsub.f32 1.5, %v367
        %v369 = vmul.f32 %v364, %v368
        %v370 = vmul.f32 %v327, %v369
        %vm371 = vcmp.eq.f32.partialorder %v327, inf
        %v372 = vsel %vm371, %v327, %v370
        %vm373 = vcmp.eq.f32.partialorder %v327, 0.0
        %v374 = vand.u32 %v327, 2147483648
        %v375 = vsel %vm373, %v374, %v372
        %v376 = vmul.f32 %v324, %v339
        %v377 = vmul.f32 %v325, %v351
        %v378 = vmul.f32 %v326, %v363
        %v379 = vmul.f32 %v327, %v375
        %v380 = vmul.f32 %v296, %v339
        %v381 = vmul.f32 %v319, %v351
        %v382 = vmul.f32 %v299, %v363
        %v383 = vmul.f32 %v322, %v375
        %v385 = vsel %vm271, %v265, 0
        %v388 = vsel %vm271, %v266, 0
        %390 = vmatpush.msra.mxu0 0.0
        %391 = vmatpush.msra.mxu0 0.0
        %392 = vmatpush.msra.mxu0 0.0
        %393 = vmatpush.msra.mxu0 0.0
        %394 = vmatpush.msra.mxu0 0.0
        %395 = vmatpush.msra.mxu0 0.0
        %396 = vmatpush.msra.mxu0 0.0
        %397 = vmatpush.msra.mxu0 0.0
        %398 = vmatpush.msra.mxu0 0.0
        %399 = vmatpush.msra.mxu0 0.0
        %400 = vmatpush.msra.mxu0 0.0
        %401 = vmatpush.msra.mxu0 0.0
        %402 = vmatpush.msra.mxu0 0.0
        %403 = vmatpush.msra.mxu0 0.0
        %404 = vmatpush.msra.mxu0 %v378
        %405 = vmatpush.msra.mxu0 %v376
        %406 = vmatmul.f32.gmra.mxu0 %v385
        %v407 = vpop.f32.mrf.mxu0
        %v408 = vadd.f32 0.04, %v407
        %409 = vmatmul.f32.gmra.mxu0 %v388
        %v410 = vpop.f32.mrf.mxu0
        %v411 = vadd.f32 0.04, %v410
        %412 = vdwg.mxu0
        %413 = vmatpush.msra.mxu0 0.0
        %414 = vmatpush.msra.mxu0 0.0
        %415 = vmatpush.msra.mxu0 0.0
        %416 = vmatpush.msra.mxu0 0.0
        %417 = vmatpush.msra.mxu0 0.0
        %418 = vmatpush.msra.mxu0 0.0
        %419 = vmatpush.msra.mxu0 0.0
        %420 = vmatpush.msra.mxu0 0.0
        %421 = vmatpush.msra.mxu0 0.0
        %422 = vmatpush.msra.mxu0 0.0
        %423 = vmatpush.msra.mxu0 0.0
        %424 = vmatpush.msra.mxu0 0.0
        %425 = vmatpush.msra.mxu0 0.0
        %426 = vmatpush.msra.mxu0 0.0
        %427 = vmatpush.msra.mxu0 %v379
        %428 = vmatpush.msra.mxu0 %v377
        %429 = vmatmul.f32.gmra.mxu0 %v385
        %v430 = vpop.f32.mrf.mxu0
        %v431 = vadd.f32 0.04, %v430
        %432 = vmatmul.f32.gmra.mxu0 %v388
        %v433 = vpop.f32.mrf.mxu0
        %v434 = vadd.f32 0.04, %v433
        %435 = vdwg.mxu0
        %v436 = vrcp.pop %v408
        %v437 = vrcp.pop %v431
        %v438 = vrcp.pop %v411
        %v439 = vrcp.pop %v434
        %v440 = vmul.f32 %v408, %v436
        %v441 = vmul.f32 %v431, %v437
        %v442 = vmul.f32 %v411, %v438
        %v443 = vmul.f32 %v434, %v439
        %v444 = vsub.f32 2.0, %v440
        %v445 = vsub.f32 2.0, %v441
        %v446 = vsub.f32 2.0, %v442
        %v447 = vsub.f32 2.0, %v443
        %v448 = vmul.f32 %v436, %v444
        %v449 = vmul.f32 %v437, %v445
        %v450 = vmul.f32 %v438, %v446
        %v451 = vmul.f32 %v439, %v447
        %452 = vst [vmem:[%s252] sm:$0xff] %v296
        %453 = vst [vmem:[%s252 + $0x8] sm:$0xff] %v319
        %454 = vst [vmem:[%s252 + $0x10] sm:$0xff] %v299
        %455 = vst [vmem:[%s252 + $0x18] sm:$0xff] %v322
        %v456 = vmul.f32 %v380, %v448
        %v457 = vmul.f32 %v381, %v449
        %v458 = vmul.f32 %v382, %v450
        %v459 = vmul.f32 %v383, %v451
        %460 = vst [vmem:[%s259] sm:$0xff] %v456
        %461 = vst [vmem:[%s259 + $0x8] sm:$0xff] %v457
        %462 = vst [vmem:[%s259 + $0x10] sm:$0xff] %v458
        %463 = vst [vmem:[%s259 + $0x18] sm:$0xff] %v459
        %s464 = sand.u32 %s100, 1
        %s465 = scalar_lea.sflag [#allocation4], %s464
        %s466 = sand.u32 %s100, 1
        %s467 = smul.addr %s466, 32
        %s468 = scalar_lea.vmem [#allocation8], %s467
        %s469 = sand.u32 %s126, 1
        %s470 = scalar_lea.sflag [#allocation10], %s469
        %s471 = sand.u32 %s126, 1
        %s472 = smul.addr %s471, 32
        %s473 = scalar_lea.vmem [#allocation9], %s472
        // Predicated region
        $region45: #{tpu_custom_call.1} parent=31 // pred_check
          %p474 = pneg %p110
        $region46: #{tpu_custom_call.1} parent=31 // pred_check_branch
          %476 = sbr.rel (%p474) target = $region48
        $region47: #{tpu_custom_call.1} parent=31 // pred_region
          %s477 = smul.u32 2, %s24
          %479 = vsyncadd %s465, 0
          %s480 = smul.addr %s477, 8
          %s481 = scalar_lea.hbm %s3, %s480
          %s482 = sshll.u32 %s468, 4
          %s483 = int_to_ptr.vmem [resolvable:$true] %s482
          %s484 = sshll.u32 %s481, 4
          %s485 = int_to_ptr.hbm [resolvable:$true] %s484
          %490 = dma.vmem_to_hbm [thread:$0]  %s483, 512, %s485, %s465, 256, 512, 16
        $region48: #{tpu_custom_call.1} parent=31 // pred_fallthru
          _
        // Predicated region
        $region49: #{tpu_custom_call.1} parent=31 // pred_check
          %p491 = pneg %p136
        $region50: #{tpu_custom_call.1} parent=31 // pred_check_branch
          %493 = sbr.rel (%p491) target = $region52
        $region51: #{tpu_custom_call.1} parent=31 // pred_region
          %s494 = smul.u32 2, %s24
          %496 = vsyncadd %s470, 0
          %s497 = smul.addr %s494, 8
          %s498 = scalar_lea.hbm %s4, %s497
          %s499 = sshll.u32 %s473, 4
          %s500 = int_to_ptr.vmem [resolvable:$true] %s499
          %s501 = sshll.u32 %s498, 4
          %s502 = int_to_ptr.hbm [resolvable:$true] %s501
          %507 = dma.vmem_to_hbm [thread:$0]  %s500, 512, %s502, %s470, 256, 512, 16
        $region52: #{tpu_custom_call.1} parent=31 // pred_fallthru
          _
      $region32: #{tpu_custom_call.1} parent=5 // pred_fallthru
        _
      %p508 = scmp.le.s32.totalorder 2, %s19
      // Predicated region
      $region53: #{tpu_custom_call.1} parent=5 // pred_check
        %p509 = pneg %p508
      $region54: #{tpu_custom_call.1} parent=5 // pred_check_branch
        %511 = sbr.rel (%p509) target = $region56
      $region55: #{tpu_custom_call.1} parent=5 // pred_region
        %s512 = ssub.s32 %s19, 2
        // Predicated region
        $region57: #{tpu_custom_call.1} parent=55 // pred_check
          %p513 = pneg %p116
        $region58: #{tpu_custom_call.1} parent=55 // pred_check_branch
          %515 = sbr.rel (%p513) target = $region60
        $region59: #{tpu_custom_call.1} parent=55 // pred_region
          %s516 = sand.u32 %s101, 1
          %s517 = scalar_lea.sflag [#allocation4], %s516
          %s518 = sand.u32 %s101, 1
          %s519 = smul.addr %s518, 32
          %s520 = scalar_lea.vmem [#allocation8], %s519
          %522 = dma.done %s517, 512
        $region60: #{tpu_custom_call.1} parent=55 // pred_fallthru
          _
        // Predicated region
        $region61: #{tpu_custom_call.1} parent=55 // pred_check
          %p523 = pneg %p142
        $region62: #{tpu_custom_call.1} parent=55 // pred_check_branch
          %525 = sbr.rel (%p523) target = $region64
        $region63: #{tpu_custom_call.1} parent=55 // pred_region
          %s526 = sand.u32 %s127, 1
          %s527 = scalar_lea.sflag [#allocation10], %s526
          %s528 = sand.u32 %s127, 1
          %s529 = smul.addr %s528, 32
          %s530 = scalar_lea.vmem [#allocation9], %s529
          %532 = dma.done %s527, 512
        $region64: #{tpu_custom_call.1} parent=55 // pred_fallthru
          _
      $region56: #{tpu_custom_call.1} parent=5 // pred_fallthru
        _
    $region6: #{tpu_custom_call.1} parent=1 // loop_footer
      %s23 = sadd.s32 1, %s19
    $region7: #{tpu_custom_call.1} parent=1 // loop_footer_branch
      %18 = sbr.rel target = $region3
    $region8: #{tpu_custom_call.1} parent=1 // loop_exit
      _
    %533 = vsyncpa [#allocation3], 1
    %s534 = scalar_lea.sflag [#allocation3], 1
    %535 = vsyncpa %s534, 1
    %536 = vsyncpa [#allocation6], 1
    %537 = vsyncpa [#allocation4], 1
    %s538 = scalar_lea.sflag [#allocation4], 1
    %539 = vsyncpa %s538, 1
    %540 = vsyncpa [#allocation10], 1
    %s541 = scalar_lea.sflag [#allocation10], 1
    %542 = vsyncpa %s541, 1

</llo_original>
